<compile_context>
chip_gen: v7x
topology: tpu7x:2x2x1
jax: 0.10.0
libtpu: 0.0.40
codegen_flags: <defaults>
</compile_context>

<pallas_src>
import functools

import jax
import jax.numpy as jnp
from jax.experimental import pallas as pl
from jax.experimental.pallas import tpu as pltpu


def _attn_output_kernel(x_ref, w_ref, res_ref, p_ref, o_ref, *, eps, mxu_dtype):
    # Cast activations to the MXU dtype in-kernel (keeps HBM traffic at the
    # source dtype width; the dot still accumulates in f32).
    x = x_ref[...]
    if mxu_dtype is not None and x.dtype != jnp.dtype(mxu_dtype):
        x = x.astype(mxu_dtype)
    h = jnp.dot(x, w_ref[...], preferred_element_type=jnp.float32)

    # bias + Dropout(identity at inference) + residual, all in f32.
    bias = p_ref[0:1, :].astype(jnp.float32)
    y = h + bias + res_ref[...].astype(jnp.float32)

    # LayerNorm over the hidden/lane axis, eps = 1e-12 (BertLayerNorm).
    # Single-pass moments; clamp variance at 0 against cancellation.
    mean = jnp.mean(y, axis=-1, keepdims=True)
    mean_sq = jnp.mean(y * y, axis=-1, keepdims=True)
    var = jnp.maximum(mean_sq - mean * mean, 0.0)
    inv = jax.lax.rsqrt(var + eps)

    gamma = p_ref[1:2, :].astype(jnp.float32)
    beta = p_ref[2:3, :].astype(jnp.float32)
    o_ref[...] = ((y - mean) * inv * gamma + beta).astype(o_ref.dtype)


def _round_up(x, m):
    return ((x + m - 1) // m) * m


def _vmem_cap_bytes():
    # ~75% of physical VMEM: ~48 MiB on v7x (64 MiB/TC), ~96 MiB on v5e/v6e
    # (128 MiB), leaving headroom for compiler-internal scratch.
    try:
        cap = int(pltpu.get_tpu_info().vmem_capacity_bytes)
    except Exception:
        cap = 64 << 20  # conservative (v7x per-TensorCore)
    return (cap * 3) // 4


def bert_attn_output(hidden_states, input_tensor, w, b, gamma, beta,
                     *, eps=1e-12, row_tile=None, mxu_dtype=jnp.bfloat16,
                     out_dtype=None):
    """hidden_states, input_tensor: [B, S, H]; w: [H, H] (x @ W layout);
    b, gamma, beta: [H].  mxu_dtype controls the matmul input dtype (bf16 by
    default; accumulation and LayerNorm math stay f32; pass None for full f32).
    out_dtype lets downstream consumers request e.g. bf16 outputs."""
    B, S, H = hidden_states.shape
    if out_dtype is None:
        out_dtype = hidden_states.dtype
    w_dtype = mxu_dtype if mxu_dtype is not None else w.dtype

    M = B * S
    if row_tile is None:
        row_tile = 512 if mxu_dtype is None else 1024

    # Row tile: multiple of 8; capped at ~ceil(M/2) so the grid has at least
    # two steps (load-balances v7x's two TensorCores; inert on v5e/v6e).
    tm_cap = _round_up(max(-(-M // 2), 1), 8)
    tm = max(8, min(_round_up(row_tile, 8), tm_cap))
    grid = (pl.cdiv(M, tm),)  # ragged final block handled (masked) by Pallas

    # No wrapper-side pad/cast passes over the activations.
    x2 = hidden_states.reshape(M, H)
    r2 = input_tensor.reshape(M, H)
    w_c = w.astype(w_dtype)
    # Pack bias / gamma / beta into one (3, H) f32 operand.
    params = jnp.stack([b, gamma, beta], axis=0).astype(jnp.float32)

    # VMEM budget: double-buffered x/res/out tiles + resident weight + params
    # + f32 intermediates headroom; no extra fudge factor; per-generation cap.
    tile_bytes = tm * H * (x2.dtype.itemsize + r2.dtype.itemsize
                           + jnp.dtype(out_dtype).itemsize)
    need = (2 * tile_bytes
            + 2 * H * H * jnp.dtype(w_dtype).itemsize
            + 2 * 3 * H * 4
            + 2 * tm * H * 4          # in-kernel f32 intermediates
            + (2 << 20))              # compiler scratch headroom
    vmem_limit = int(min(max(need, 16 << 20), _vmem_cap_bytes()))

    out = pl.pallas_call(
        functools.partial(_attn_output_kernel, eps=eps, mxu_dtype=mxu_dtype),
        out_shape=jax.ShapeDtypeStruct((M, H), out_dtype),
        grid_spec=pltpu.PrefetchScalarGridSpec(
            num_scalar_prefetch=0,
            grid=grid,
            in_specs=[
                pl.BlockSpec((tm, H), lambda i: (i, 0)),   # hidden_states rows
                pl.BlockSpec((H, H), lambda i: (0, 0)),    # weight (resident)
                pl.BlockSpec((tm, H), lambda i: (i, 0)),   # residual rows
                pl.BlockSpec((3, H), lambda i: (0, 0)),    # [bias; gamma; beta]
            ],
            out_specs=pl.BlockSpec((tm, H), lambda i: (i, 0)),
        ),
        compiler_params=pltpu.CompilerParams(
            dimension_semantics=("parallel",),
            vmem_limit_bytes=vmem_limit),
    )(x2, w_c, r2, params)

    return out.reshape(B, S, H)


def _reference(hidden_states, input_tensor, w, b, gamma, beta, eps=1e-12):
    h = jnp.einsum("bsh,hk->bsk", hidden_states, w) + b
    y = h + input_tensor
    mean = jnp.mean(y, axis=-1, keepdims=True)
    var = jnp.mean((y - mean) ** 2, axis=-1, keepdims=True)
    return (y - mean) * jax.lax.rsqrt(var + eps) * gamma + beta


def _make_inputs(key, B, S, H):
    k1, k2, k3, k4 = jax.random.split(key, 4)
    hidden_states = jax.random.normal(k1, (B, S, H), dtype=jnp.float32)
    input_tensor = jax.random.normal(k2, (B, S, H), dtype=jnp.float32)
    # nn.Linear-style fan-in init; w stored as [in, out] (x @ w + b == x @ W.T + b).
    bound = 1.0 / jnp.sqrt(H)
    w = jax.random.uniform(k3, (H, H), minval=-bound, maxval=bound,
                           dtype=jnp.float32)
    b = jax.random.uniform(k4, (H,), minval=-bound, maxval=bound,
                           dtype=jnp.float32)
    gamma = jnp.ones((H,), dtype=jnp.float32)   # LayerNorm weight init
    beta = jnp.zeros((H,), dtype=jnp.float32)   # LayerNorm bias init
    return hidden_states, input_tensor, w, b, gamma, beta


if __name__ == "__main__":
    key = jax.random.PRNGKey(0)

    # 1) Small shape consistent with the module; exact f32 MXU path.
    B, S, H = 2, 8, 32
    hs, res, w, b, gamma, beta = _make_inputs(key, B, S, H)
    ref = _reference(hs, res, w, b, gamma, beta)

    out_f32 = jax.block_until_ready(
        bert_attn_output(hs, res, w, b, gamma, beta, mxu_dtype=None))
    assert out_f32.shape == (B, S, H)
    assert jnp.allclose(out_f32, ref, atol=1e-5, rtol=1e-5), "f32 mismatch"

    # 2) Default bf16-MXU path (f32 accumulation + f32 LayerNorm), looser tol.
    out_bf16 = jax.block_until_ready(
        bert_attn_output(hs, res, w, b, gamma, beta))
    assert jnp.allclose(out_bf16, ref, atol=5e-2, rtol=5e-2), "bf16 mismatch"

    # 3) Multi-step grid with a ragged final block (M=120, tm=32 -> 4 steps,
    #    last block has 24 valid rows) — no wrapper padding, Pallas masks it.
    B2, S2, H2 = 3, 40, 128
    hs2, res2, w2, b2, g2, be2 = _make_inputs(jax.random.PRNGKey(1), B2, S2, H2)
    out2 = jax.block_until_ready(
        bert_attn_output(hs2, res2, w2, b2, g2, be2, row_tile=32,
                         mxu_dtype=None))
    ref2 = _reference(hs2, res2, w2, b2, g2, be2)
    assert out2.shape == (B2, S2, H2)
    assert jnp.allclose(out2, ref2, atol=2e-5, rtol=2e-5), "ragged mismatch"

    # TODO(synk): the rest of lxrt_featextraction (embedding lookups, softmax
    # attention, GELU intermediate, pooler) is left to XLA; this kernel covers
    # the fused dense+dropout+residual+LayerNorm block (bert_attnoutput /
    # bert_output) that dominates per-token HBM traffic.
    print("KERNEL_OK")
</pallas_src>

<mosaic_0001>
module attributes {stable_mosaic.version = 11 : i64} {
  func.func @_attn_output_kernel(%arg0: i32, %arg1: memref<8x32xf32, #tpu.memory_space<vmem>>, %arg2: memref<32x32xf32, #tpu.memory_space<vmem>>, %arg3: memref<8x32xf32, #tpu.memory_space<vmem>>, %arg4: memref<3x32xf32, #tpu.memory_space<vmem>>, %arg5: memref<8x32xf32, #tpu.memory_space<vmem>>) attributes {dimension_semantics = [#tpu.dimension_semantics<parallel>], iteration_bounds = array<i64: 2>, scalar_prefetch = 0 : i64, scratch_operands = 0 : i64, tpu.core_type = #tpu.core_type<tc>, window_params = [{transform_indices = @transform_0, window_bounds = array<i64: 8, 32>}, {pipeline_mode = #tpu.pipeline_mode<synchronous>, transform_indices = @transform_1, window_bounds = array<i64: 32, 32>}, {transform_indices = @transform_2, window_bounds = array<i64: 8, 32>}, {pipeline_mode = #tpu.pipeline_mode<synchronous>, transform_indices = @transform_3, window_bounds = array<i64: 3, 32>}, {transform_indices = @transform_4, window_bounds = array<i64: 8, 32>}]} {
    %c0 = arith.constant 0 : index
    %c0_0 = arith.constant 0 : index
    %0 = vector.load %arg1[%c0, %c0_0] : memref<8x32xf32, #tpu.memory_space<vmem>>, vector<8x32xf32>
    %c0_1 = arith.constant 0 : index
    %c0_2 = arith.constant 0 : index
    %1 = vector.load %arg2[%c0_1, %c0_2] : memref<32x32xf32, #tpu.memory_space<vmem>>, vector<32x32xf32>
    %cst = arith.constant dense<0.000000e+00> : vector<8x32xf32>
    %2 = tpu.matmul %0, %1, %cst {dimension_numbers = #tpu.dot_dimension_numbers<[1], [0], [0], [1], [0, 0, 1, 1], [], []>} : vector<8x32xf32>, vector<32x32xf32>, vector<8x32xf32> -> vector<8x32xf32>
    %c0_3 = arith.constant 0 : index
    %c0_4 = arith.constant 0 : index
    %3 = vector.load %arg4[%c0_3, %c0_4] : memref<3x32xf32, #tpu.memory_space<vmem>>, vector<1x32xf32>
    %4 = vector.broadcast %3 : vector<1x32xf32> to vector<8x32xf32>
    %5 = arith.addf %2, %4 : vector<8x32xf32>
    %c0_5 = arith.constant 0 : index
    %c0_6 = arith.constant 0 : index
    %6 = vector.load %arg3[%c0_5, %c0_6] : memref<8x32xf32, #tpu.memory_space<vmem>>, vector<8x32xf32>
    %7 = arith.addf %5, %6 : vector<8x32xf32>
    %cst_7 = arith.constant dense<0.000000e+00> : vector<8xf32>
    %8 = vector.multi_reduction <add>, %7, %cst_7 [1] : vector<8x32xf32> to vector<8xf32>
    %9 = vector.shape_cast %8 : vector<8xf32> to vector<8x1xf32>
    %cst_8 = arith.constant 3.200000e+01 : f32
    %10 = vector.broadcast %cst_8 : f32 to vector<8x1xf32>
    %11 = arith.divf %9, %10 : vector<8x1xf32>
    %12 = arith.mulf %7, %7 : vector<8x32xf32>
    %cst_9 = arith.constant dense<0.000000e+00> : vector<8xf32>
    %13 = vector.multi_reduction <add>, %12, %cst_9 [1] : vector<8x32xf32> to vector<8xf32>
    %14 = vector.shape_cast %13 : vector<8xf32> to vector<8x1xf32>
    %cst_10 = arith.constant 3.200000e+01 : f32
    %15 = vector.broadcast %cst_10 : f32 to vector<8x1xf32>
    %16 = arith.divf %14, %15 : vector<8x1xf32>
    %17 = arith.mulf %11, %11 : vector<8x1xf32>
    %18 = arith.subf %16, %17 : vector<8x1xf32>
    %cst_11 = arith.constant 0.000000e+00 : f32
    %19 = vector.broadcast %cst_11 : f32 to vector<8x1xf32>
    %20 = arith.maximumf %18, %19 : vector<8x1xf32>
    %cst_12 = arith.constant 9.99999996E-13 : f32
    %21 = vector.broadcast %cst_12 : f32 to vector<8x1xf32>
    %22 = arith.addf %20, %21 : vector<8x1xf32>
    %23 = math.rsqrt %22 : vector<8x1xf32>
    %c1 = arith.constant 1 : index
    %c0_13 = arith.constant 0 : index
    %24 = vector.load %arg4[%c1, %c0_13] : memref<3x32xf32, #tpu.memory_space<vmem>>, vector<1x32xf32>
    %c2 = arith.constant 2 : index
    %c0_14 = arith.constant 0 : index
    %25 = vector.load %arg4[%c2, %c0_14] : memref<3x32xf32, #tpu.memory_space<vmem>>, vector<1x32xf32>
    %26 = vector.broadcast %11 : vector<8x1xf32> to vector<8x32xf32>
    %27 = arith.subf %7, %26 : vector<8x32xf32>
    %28 = vector.broadcast %23 : vector<8x1xf32> to vector<8x32xf32>
    %29 = arith.mulf %27, %28 : vector<8x32xf32>
    %30 = vector.broadcast %24 : vector<1x32xf32> to vector<8x32xf32>
    %31 = arith.mulf %29, %30 : vector<8x32xf32>
    %32 = vector.broadcast %25 : vector<1x32xf32> to vector<8x32xf32>
    %33 = arith.addf %31, %32 : vector<8x32xf32>
    %c0_15 = arith.constant 0 : index
    %c0_16 = arith.constant 0 : index
    %34 = vector.load %arg5[%c0_15, %c0_16] : memref<8x32xf32, #tpu.memory_space<vmem>>, vector<8x32xf32>
    tpu.vector_store %arg5[%c0_15, %c0_16], %33 {strides = array<i32>} : memref<8x32xf32, #tpu.memory_space<vmem>>, vector<8x32xf32>,
    return
  }
  func.func @transform_0(%arg0: i32) -> (i32, i32) {
    %c0_i32 = arith.constant 0 : i32
    %c0_i32_0 = arith.constant 0 : i32
    return %arg0, %c0_i32 : i32, i32
  }
  func.func @transform_1(%arg0: i32) -> (i32, i32) {
    %c0_i32 = arith.constant 0 : i32
    %c0_i32_0 = arith.constant 0 : i32
    %c0_i32_1 = arith.constant 0 : i32
    return %c0_i32, %c0_i32_0 : i32, i32
  }
  func.func @transform_2(%arg0: i32) -> (i32, i32) {
    %c0_i32 = arith.constant 0 : i32
    %c0_i32_0 = arith.constant 0 : i32
    return %arg0, %c0_i32 : i32, i32
  }
  func.func @transform_3(%arg0: i32) -> (i32, i32) {
    %c0_i32 = arith.constant 0 : i32
    %c0_i32_0 = arith.constant 0 : i32
    %c0_i32_1 = arith.constant 0 : i32
    return %c0_i32, %c0_i32_0 : i32, i32
  }
  func.func @transform_4(%arg0: i32) -> (i32, i32) {
    %c0_i32 = arith.constant 0 : i32
    %c0_i32_0 = arith.constant 0 : i32
    return %arg0, %c0_i32 : i32, i32
  }
}

</mosaic_0001>

<llo_original>
// kernel: tpu_custom_call.1
$region0: #{tpu_custom_call.1}
  #allocation0 [shape = 'u32[]', space=smem, size = 0x4, offset = 0x4, fixed_abs, tag = 'smem constant byte address 0x4 - core index']
  #allocation1 [shape = 'u32[144,128]{1,0:T(1,128)}', space=vmem, size = 0x12000, scoped, tag = 'internal scratch']
  %s0 = inlined_call_operand.hbm [shape: f32[16,32], index: 0, kind: input, shape index: {}]
  %s1 = inlined_call_operand.hbm [shape: f32[32,32], index: 1, kind: input, shape index: {}]
  %s2 = inlined_call_operand.hbm [shape: f32[16,32], index: 2, kind: input, shape index: {}]
  %s3 = inlined_call_operand.vmem [shape: f32[3,32], index: 3, kind: input, shape index: {}]
  %s4 = inlined_call_operand.hbm [shape: f32[16,32], index: 4, kind: output, shape index: {}]
  %s5 = sld [smem:[#allocation0]]
  $region61: #{tpu_custom_call.1} parent=0
    _
  %s7 = ssub.s32 1, %s5
  %s8 = scalar_select 0, %s7, %s5
  $region1: #{tpu_custom_call.1} parent=0
    #allocation2 [shape = 'u8[8192]{0}', space=vmem, size = 0x2000, scoped, tag = 'input window, operand 0']
    #allocation3 [shape = 's32[2]{0}', space=sflag, size = 0x8, scoped, tag = 'scoped memory for tpu_custom_call.1']
    #allocation4 [shape = 's32[2]{0}', space=sflag, size = 0x8, scoped, tag = 'scoped memory for tpu_custom_call.1']
    #allocation5 [shape = 'u8[16384]{0}', space=vmem, size = 0x4000, scoped, tag = 'input window, operand 1, single buffered']
    #allocation6 [shape = 's32[1]{0}', space=sflag, size = 0x4, scoped, tag = 'scoped memory for tpu_custom_call.1']
    #allocation7 [shape = 'u8[8192]{0}', space=vmem, size = 0x2000, scoped, tag = 'input window, operand 2']
    #allocation8 [shape = 'u8[8192]{0}', space=vmem, size = 0x2000, scoped, tag = 'output window, operand 0']
    %9 = vsyncpa [#allocation3], 0
    %s10 = scalar_lea.sflag [#allocation3], 1
    %11 = vsyncpa %s10, 0
    %12 = vsyncpa [#allocation6], 0
    %13 = vsyncpa [#allocation4], 0
    %s14 = scalar_lea.sflag [#allocation4], 1
    %15 = vsyncpa %s14, 0
    loop: start=0, step=1, limit=4
    $region2: #{tpu_custom_call.1} parent=1 // loop_pre_header
      _
    $region3: #{tpu_custom_call.1} parent=1 // loop_header
      %s17 = sphi 0, %s21
      %p18 = scmp.ge.s32.totalorder %s17, 4
      %s27 = sphi 0, %s29
      %s30 = sphi 0, %s27
      %s31 = sphi 0, %s30
      %s47 = sphi 0, %s31
      %s51 = sphi 0, %s51
      %s53 = sphi 0, %s51
      %s54 = sphi 0, %s53
      %s68 = sphi 0, %s54
      %s74 = sphi 0, %s76
      %s77 = sphi 0, %s74
      %s78 = sphi 0, %s77
      %s94 = sphi 0, %s78
      %s98 = sphi 0, %s98
      %s100 = sphi 0, %s98
      %s101 = sphi 0, %s100
      %s115 = sphi 0, %s101
      %s121 = sphi 0, %s123
      %s124 = sphi 0, %s121
      %s125 = sphi 0, %s124
      %s141 = sphi 0, %s125
    $region4: #{tpu_custom_call.1} parent=1 // loop_header_branch
      %20 = sbr.rel (%p18) target = $region8
    $region5: #{tpu_custom_call.1} parent=1 // loop_body
      %s22 = ssub.s32 %s17, 1
      %s23 = ssub.s32 %s17, 2
      %s24 = sadd.s32 %s17, 1
      %s25 = ssub.s32 %s17, %s24
      %p26 = scmp.eq.s32.totalorder %s25, 0
      %s28 = sadd.s32 %s27, 1
      %s29 = scalar_select %p26, %s27, %s28
      %p32 = pneg %p26
      %p33 = scmp.eq.s32.totalorder %s17, 1
      %p34 = por %p32, %p33
      %p35 = scmp.ne.s32.totalorder %s27, %s30
      %p36 = scmp.eq.s32.totalorder %s17, 0
      %p37 = por %p35, %p36
      %p38 = scmp.ne.s32.totalorder %s27, %s30
      %p39 = scmp.eq.s32.totalorder %s22, 1
      %p40 = por %p38, %p39
      %p41 = scmp.ne.s32.totalorder %s30, %s31
      %p42 = scmp.eq.s32.totalorder %s22, 0
      %p43 = por %p41, %p42
      %p44 = scmp.ne.s32.totalorder %s30, %s31
      %p45 = scmp.eq.s32.totalorder %s23, 1
      %p46 = por %p44, %p45
      %p48 = scmp.ne.s32.totalorder %s31, %s47
      %p49 = scmp.eq.s32.totalorder %s23, 0
      %p50 = por %p48, %p49
      %s52 = sadd.s32 %s51, 1
      %p55 = scmp.eq.s32.totalorder %s17, 1
      %p56 = scmp.ne.s32.totalorder %s51, %s53
      %p57 = scmp.eq.s32.totalorder %s17, 0
      %p58 = por %p56, %p57
      %p59 = scmp.ne.s32.totalorder %s51, %s53
      %p60 = scmp.eq.s32.totalorder %s22, 1
      %p61 = por %p59, %p60
      %p62 = scmp.ne.s32.totalorder %s53, %s54
      %p63 = scmp.eq.s32.totalorder %s22, 0
      %p64 = por %p62, %p63
      %p65 = scmp.ne.s32.totalorder %s53, %s54
      %p66 = scmp.eq.s32.totalorder %s23, 1
      %p67 = por %p65, %p66
      %p69 = scmp.ne.s32.totalorder %s54, %s68
      %p70 = scmp.eq.s32.totalorder %s23, 0
      %p71 = por %p69, %p70
      %s72 = ssub.s32 %s17, %s24
      %p73 = scmp.eq.s32.totalorder %s72, 0
      %s75 = sadd.s32 %s74, 1
      %s76 = scalar_select %p73, %s74, %s75
      %p79 = pneg %p73
      %p80 = scmp.eq.s32.totalorder %s17, 1
      %p81 = por %p79, %p80
      %p82 = scmp.ne.s32.totalorder %s74, %s77
      %p83 = scmp.eq.s32.totalorder %s17, 0
      %p84 = por %p82, %p83
      %p85 = scmp.ne.s32.totalorder %s74, %s77
      %p86 = scmp.eq.s32.totalorder %s22, 1
      %p87 = por %p85, %p86
      %p88 = scmp.ne.s32.totalorder %s77, %s78
      %p89 = scmp.eq.s32.totalorder %s22, 0
      %p90 = por %p88, %p89
      %p91 = scmp.ne.s32.totalorder %s77, %s78
      %p92 = scmp.eq.s32.totalorder %s23, 1
      %p93 = por %p91, %p92
      %p95 = scmp.ne.s32.totalorder %s78, %s94
      %p96 = scmp.eq.s32.totalorder %s23, 0
      %p97 = por %p95, %p96
      %s99 = sadd.s32 %s98, 1
      %p102 = scmp.eq.s32.totalorder %s17, 1
      %p103 = scmp.ne.s32.totalorder %s98, %s100
      %p104 = scmp.eq.s32.totalorder %s17, 0
      %p105 = por %p103, %p104
      %p106 = scmp.ne.s32.totalorder %s98, %s100
      %p107 = scmp.eq.s32.totalorder %s22, 1
      %p108 = por %p106, %p107
      %p109 = scmp.ne.s32.totalorder %s100, %s101
      %p110 = scmp.eq.s32.totalorder %s22, 0
      %p111 = por %p109, %p110
      %p112 = scmp.ne.s32.totalorder %s100, %s101
      %p113 = scmp.eq.s32.totalorder %s23, 1
      %p114 = por %p112, %p113
      %p116 = scmp.ne.s32.totalorder %s101, %s115
      %p117 = scmp.eq.s32.totalorder %s23, 0
      %p118 = por %p116, %p117
      %s119 = ssub.s32 %s17, %s24
      %p120 = scmp.eq.s32.totalorder %s119, 0
      %s122 = sadd.s32 %s121, 1
      %s123 = scalar_select %p120, %s121, %s122
      %p126 = pneg %p120
      %p127 = scmp.eq.s32.totalorder %s17, 1
      %p128 = por %p126, %p127
      %p129 = scmp.ne.s32.totalorder %s121, %s124
      %p130 = scmp.eq.s32.totalorder %s17, 0
      %p131 = por %p129, %p130
      %p132 = scmp.ne.s32.totalorder %s121, %s124
      %p133 = scmp.eq.s32.totalorder %s22, 1
      %p134 = por %p132, %p133
      %p135 = scmp.ne.s32.totalorder %s124, %s125
      %p136 = scmp.eq.s32.totalorder %s22, 0
      %p137 = por %p135, %p136
      %p138 = scmp.ne.s32.totalorder %s124, %s125
      %p139 = scmp.eq.s32.totalorder %s23, 1
      %p140 = por %p138, %p139
      %p142 = scmp.ne.s32.totalorder %s125, %s141
      %p143 = scmp.eq.s32.totalorder %s23, 0
      %p144 = por %p142, %p143
      %p145 = scmp.le.s32.totalorder 1, %s17
      %p146 = scmp.lt.s32.totalorder %s17, 3
      %p147 = pnand %p145, %p146
      %p148 = pneg %p147
      // Predicated region
      $region9: #{tpu_custom_call.1} parent=5 // pred_check
        _
      $region10: #{tpu_custom_call.1} parent=5 // pred_check_branch
        %150 = sbr.rel (%p147) target = $region12
      $region11: #{tpu_custom_call.1} parent=5 // pred_region
        %s151 = ssub.s32 %s17, 1
        // Predicated region
        $region13: #{tpu_custom_call.1} parent=11 // pred_check
          %p152 = pneg %p64
        $region14: #{tpu_custom_call.1} parent=11 // pred_check_branch
          %154 = sbr.rel (%p152) target = $region16
        $region15: #{tpu_custom_call.1} parent=11 // pred_region
          %s156 = ssub.s32 512, 512
          %157 = vsyncadd [#allocation6], %s156
          %s158 = sshll.u32 [#allocation5], 4
          %s159 = int_to_ptr.vmem [resolvable:$true] %s158
          %164 = dma.hbm_to_vmem [thread:$0]  %s1, 512, %s159, [#allocation6], 128, 128, 8
        $region16: #{tpu_custom_call.1} parent=11 // pred_fallthru
          _
        // Predicated region
        $region17: #{tpu_custom_call.1} parent=11 // pred_check
          %p165 = pneg %p111
        $region18: #{tpu_custom_call.1} parent=11 // pred_check_branch
          %167 = sbr.rel (%p165) target = $region20
        $region19: #{tpu_custom_call.1} parent=11 // pred_region
          _
        $region20: #{tpu_custom_call.1} parent=11 // pred_fallthru
          _
      $region12: #{tpu_custom_call.1} parent=5 // pred_fallthru
        _
      %p168 = scmp.lt.s32.totalorder %s17, 2
      // Predicated region
      $region21: #{tpu_custom_call.1} parent=5 // pred_check
        %p169 = pneg %p168
      $region22: #{tpu_custom_call.1} parent=5 // pred_check_branch
        %171 = sbr.rel (%p169) target = $region24
      $region23: #{tpu_custom_call.1} parent=5 // pred_region
        // Predicated region
        $region25: #{tpu_custom_call.1} parent=23 // pred_check
          %p172 = pneg %p37
        $region26: #{tpu_custom_call.1} parent=23 // pred_check_branch
          %174 = sbr.rel (%p172) target = $region28
        $region27: #{tpu_custom_call.1} parent=23 // pred_region
          %s175 = sand.u32 %s17, 1
          %s176 = scalar_lea.sflag [#allocation3], %s175
          %s177 = sand.u32 %s27, 1
          %s178 = smul.addr %s177, 8
          %s179 = scalar_lea.vmem [#allocation2], %s178
          %s181 = ssub.s32 128, 128
          %182 = vsyncadd %s176, %s181
          %s183 = smul.addr %s17, 128
          %s184 = scalar_lea.hbm %s0, %s183
          %s186 = sshll.u32 %s179, 4
          %s187 = int_to_ptr.vmem [resolvable:$true] %s186
          %189 = dma.hbm_to_vmem [thread:$0]  %s184, 128, %s187, %s176
        $region28: #{tpu_custom_call.1} parent=23 // pred_fallthru
          _
        // Predicated region
        $region29: #{tpu_custom_call.1} parent=23 // pred_check
          %p190 = pneg %p84
        $region30: #{tpu_custom_call.1} parent=23 // pred_check_branch
          %192 = sbr.rel (%p190) target = $region32
        $region31: #{tpu_custom_call.1} parent=23 // pred_region
          %s193 = sand.u32 %s17, 1
          %s194 = scalar_lea.sflag [#allocation3], %s193
          %s195 = sand.u32 %s74, 1
          %s196 = smul.addr %s195, 8
          %s197 = scalar_lea.vmem [#allocation7], %s196
          %s199 = ssub.s32 128, 128
          %200 = vsyncadd %s194, %s199
          %s201 = smul.addr %s17, 128
          %s202 = scalar_lea.hbm %s2, %s201
          %s204 = sshll.u32 %s197, 4
          %s205 = int_to_ptr.vmem [resolvable:$true] %s204
          %207 = dma.hbm_to_vmem [thread:$0]  %s202, 128, %s205, %s194
        $region32: #{tpu_custom_call.1} parent=23 // pred_fallthru
          _
      $region24: #{tpu_custom_call.1} parent=5 // pred_fallthru
        _
      %p208 = scmp.le.s32.totalorder 1, %s17
      %p209 = scmp.lt.s32.totalorder %s17, 3
      %p210 = pnand %p208, %p209
      %p211 = pneg %p210
      // Predicated region
      $region33: #{tpu_custom_call.1} parent=5 // pred_check
        _
      $region34: #{tpu_custom_call.1} parent=5 // pred_check_branch
        %213 = sbr.rel (%p210) target = $region36
      $region35: #{tpu_custom_call.1} parent=5 // pred_region
        %s214 = ssub.s32 %s17, 1
        %s215 = sand.u32 %s22, 1
        %s216 = scalar_lea.sflag [#allocation3], %s215
        %s217 = sand.u32 %s30, 1
        %s218 = smul.addr %s217, 8
        %s219 = scalar_lea.vmem [#allocation2], %s218
        // Predicated region
        $region37: #{tpu_custom_call.1} parent=35 // pred_check
          %p220 = pneg %p43
        $region38: #{tpu_custom_call.1} parent=35 // pred_check_branch
          %222 = sbr.rel (%p220) target = $region40
        $region39: #{tpu_custom_call.1} parent=35 // pred_region
          %223 = dma.done %s216, 128
        $region40: #{tpu_custom_call.1} parent=35 // pred_fallthru
          _
        // Predicated region
        $region41: #{tpu_custom_call.1} parent=35 // pred_check
          %p224 = pneg %p64
        $region42: #{tpu_custom_call.1} parent=35 // pred_check_branch
          %226 = sbr.rel (%p224) target = $region44
        $region43: #{tpu_custom_call.1} parent=35 // pred_region
          %227 = dma.done [#allocation6], 512
        $region44: #{tpu_custom_call.1} parent=35 // pred_fallthru
          _
        %s228 = sand.u32 %s22, 1
        %s229 = scalar_lea.sflag [#allocation3], %s228
        %s230 = sand.u32 %s77, 1
        %s231 = smul.addr %s230, 8
        %s232 = scalar_lea.vmem [#allocation7], %s231
        // Predicated region
        $region45: #{tpu_custom_call.1} parent=35 // pred_check
          %p233 = pneg %p90
        $region46: #{tpu_custom_call.1} parent=35 // pred_check_branch
          %235 = sbr.rel (%p233) target = $region48
        $region47: #{tpu_custom_call.1} parent=35 // pred_region
          %236 = dma.done %s229, 128
        $region48: #{tpu_custom_call.1} parent=35 // pred_fallthru
          _
        %s237 = sand.u32 %s22, 1
        %s238 = scalar_lea.sflag [#allocation3], %s237
        %s239 = sand.u32 %s30, 1
        %s240 = smul.addr %s239, 8
        %s241 = scalar_lea.vmem [#allocation2], %s240
        %p242 = pneg %p43
        %p243 = pneg %p40
        %p244 = pneg %p64
        %p245 = pneg %p61
        %s246 = sand.u32 %s22, 1
        %s247 = scalar_lea.sflag [#allocation3], %s246
        %s248 = sand.u32 %s77, 1
        %s249 = smul.addr %s248, 8
        %s250 = scalar_lea.vmem [#allocation7], %s249
        %p251 = pneg %p90
        %p252 = pneg %p87
        %p253 = pneg %p111
        %p254 = pneg %p108
        %p255 = pneg %p137
        %p256 = pneg %p134
        %s257 = sand.u32 %s124, 1
        %s258 = scalar_lea.sflag [#allocation4], %s257
        %s259 = sand.u32 %s124, 1
        %s260 = smul.addr %s259, 8
        %s261 = scalar_lea.vmem [#allocation8], %s260
        %v262 = vld [vmem:[%s219] sm:$0xff]
        %v263 = vld [vmem:[#allocation5] sm:$0xff]
        %v264 = vld [vmem:[#allocation5 + $0x8] sm:$0xff]
        %v265 = vld [vmem:[#allocation5 + $0x10] sm:$0xff]
        %v266 = vld [vmem:[#allocation5 + $0x18] sm:$0xff]
        %v267 = vld [vmem:[%s3] sm:$0x1]
        %v268 = vlaneseq
        %v269 = vshrl.u32 %v268, 7
        %v270 = vsub.s32 0, %v269
        %v271 = vrot.slane %v267, %v270
        %vm272 = vcmask 261120
        %v274 = vsel %vm272, %v262, 0
        %276 = vmatprep.subr.mxu0 0.0
        %277 = vmatpush1.msra.mxu0 %v263
        %278 = vmatprep.subr.mxu0 0.0
        %279 = vmatpush1.msra.mxu0 %v264
        %280 = vmatprep.subr.mxu0 0.0
        %281 = vmatpush1.msra.mxu0 %v265
        %282 = vmatprep.subr.mxu0 0.0
        %283 = vmatpush1.msra.mxu0 %v266
        %284 = vmatprep.subr.mxu0 0.0
        %285 = vmatpush1.msra.mxu0 0.0
        %286 = vmatprep.subr.mxu0 0.0
        %287 = vmatpush1.msra.mxu0 0.0
        %288 = vmatprep.subr.mxu0 0.0
        %289 = vmatpush1.msra.mxu0 0.0
        %290 = vmatprep.subr.mxu0 0.0
        %291 = vmatpush1.msra.mxu0 0.0
        %292 = vmatprep.subr.mxu0 0.0
        %293 = vmatpush1.msra.mxu0 0.0
        %294 = vmatprep.subr.mxu0 0.0
        %295 = vmatpush1.msra.mxu0 0.0
        %296 = vmatprep.subr.mxu0 0.0
        %297 = vmatpush1.msra.mxu0 0.0
        %298 = vmatprep.subr.mxu0 0.0
        %299 = vmatpush1.msra.mxu0 0.0
        %300 = vmatprep.subr.mxu0 0.0
        %301 = vmatpush1.msra.mxu0 0.0
        %302 = vmatprep.subr.mxu0 0.0
        %303 = vmatpush1.msra.mxu0 0.0
        %304 = vmatprep.subr.mxu0 0.0
        %305 = vmatpush1.msra.mxu0 0.0
        %306 = vmatprep.subr.mxu0 0.0
        %307 = vmatpush1.msra.mxu0 0.0
        %308 = vmatprep.subr.mxu0 0.0
        %309 = vmatpush1.msra.mxu0 0.0
        %310 = vmatprep.subr.mxu0 0.0
        %311 = vmatpush1.msra.mxu0 0.0
        %312 = vmatprep.subr.mxu0 0.0
        %313 = vmatpush1.msra.mxu0 0.0
        %314 = vmatprep.subr.mxu0 0.0
        %315 = vmatpush1.msra.mxu0 0.0
        %316 = vmatprep.subr.mxu0 0.0
        %317 = vmatpush1.msra.mxu0 0.0
        %318 = vmatprep.subr.mxu0 0.0
        %319 = vmatpush1.msra.mxu0 0.0
        %320 = vmatprep.subr.mxu0 0.0
        %321 = vmatpush1.msra.mxu0 0.0
        %322 = vmatprep.subr.mxu0 0.0
        %323 = vmatpush1.msra.mxu0 0.0
        %324 = vmatprep.subr.mxu0 0.0
        %325 = vmatpush1.msra.mxu0 0.0
        %326 = vmatprep.subr.mxu0 0.0
        %327 = vmatpush1.msra.mxu0 0.0
        %328 = vmatprep.subr.mxu0 0.0
        %329 = vmatpush1.msra.mxu0 0.0
        %330 = vmatprep.subr.mxu0 0.0
        %331 = vmatpush1.msra.mxu0 0.0
        %332 = vmatprep.subr.mxu0 0.0
        %333 = vmatpush1.msra.mxu0 0.0
        %334 = vmatprep.subr.mxu0 0.0
        %335 = vmatpush1.msra.mxu0 0.0
        %336 = vmatprep.subr.mxu0 0.0
        %337 = vmatpush1.msra.mxu0 0.0
        %338 = vmatprep.subr.mxu0 0.0
        %339 = vmatpush1.msra.mxu0 0.0
        %340 = vmatprep.mubr.f32.mxu0 0.0
        %341 = vmatmul.mubr.f32.gmra.mrb[0].mxu0 %v274
        %v342 = vpop.f32.mrb[0].mxu0
        %v343 = vadd.f32 %v271, %v342
        %v344 = vpop.f32.mrb[0].mxu0
        %345 = vdwg.mxu0
        %v346 = vld [vmem:[%s232] sm:$0xff]
        %v347 = vadd.f32 %v343, %v346
        %v348 = vsel %vm272, %v347, 0.0
        %349 = vadd.xlane.f32.xlu0 %v348
        %v350 = vpop.xlane.xlu0 %349
        %v351 = vrcp.pop 32.0
        %v352 = vmul.f32 %v350, %v351
        %v353 = vmul.f32 %v347, %v347
        %v354 = vsel %vm272, %v353, 0.0
        %355 = vadd.xlane.f32.xlu0 %v354
        %v356 = vpop.xlane.xlu0 %355
        %v357 = vmul.f32 %v356, %v351
        %v358 = vmul.f32 %v352, %v352
        %v359 = vsub.f32 %v357, %v358
        %v360 = vmax.f32 %v359, 0.0
        %v361 = vadd.f32 %v360, 1e-12
        %v362 = vrsqrt.pop %v361
        %v363 = vld [vmem:[%s3 + $0x1] sm:$0x1]
        %v364 = vld [vmem:[%s3 + $0x2] sm:$0x1]
        %v365 = vsub.f32 %v347, %v352
        %v366 = vmul.f32 %v365, %v362
        %v367 = vlaneseq
        %v368 = vshrl.u32 %v367, 7
        %v369 = vsub.s32 0, %v368
        %v370 = vrot.slane %v363, %v369
        %v371 = vmul.f32 %v366, %v370
        %v372 = vlaneseq
        %v373 = vshrl.u32 %v372, 7
        %v374 = vsub.s32 0, %v373
        %v375 = vrot.slane %v364, %v374
        %v376 = vadd.f32 %v371, %v375
        %377 = vst.msk [vmem:[%s261] sm:$0xff] %vm272, %v376
        %s378 = sand.u32 %s124, 1
        %s379 = scalar_lea.sflag [#allocation4], %s378
        %s380 = sand.u32 %s124, 1
        %s381 = smul.addr %s380, 8
        %s382 = scalar_lea.vmem [#allocation8], %s381
        // Predicated region
        $region49: #{tpu_custom_call.1} parent=35 // pred_check
          %p383 = pneg %p134
        $region50: #{tpu_custom_call.1} parent=35 // pred_check_branch
          %385 = sbr.rel (%p383) target = $region52
        $region51: #{tpu_custom_call.1} parent=35 // pred_region
          %s387 = ssub.s32 128, 128
          %388 = vsyncadd %s379, %s387
          %s389 = smul.addr %s22, 128
          %s390 = scalar_lea.hbm %s4, %s389
          %s392 = sshll.u32 %s382, 4
          %s393 = int_to_ptr.vmem [resolvable:$true] %s392
          %395 = dma.vmem_to_hbm [thread:$0]  %s393, 128, %s390, %s379
        $region52: #{tpu_custom_call.1} parent=35 // pred_fallthru
          _
      $region36: #{tpu_custom_call.1} parent=5 // pred_fallthru
        _
      %p396 = scmp.le.s32.totalorder 2, %s17
      // Predicated region
      $region53: #{tpu_custom_call.1} parent=5 // pred_check
        %p397 = pneg %p396
      $region54: #{tpu_custom_call.1} parent=5 // pred_check_branch
        %399 = sbr.rel (%p397) target = $region56
      $region55: #{tpu_custom_call.1} parent=5 // pred_region
        %s400 = ssub.s32 %s17, 2
        // Predicated region
        $region57: #{tpu_custom_call.1} parent=55 // pred_check
          %p401 = pneg %p140
        $region58: #{tpu_custom_call.1} parent=55 // pred_check_branch
          %403 = sbr.rel (%p401) target = $region60
        $region59: #{tpu_custom_call.1} parent=55 // pred_region
          %s404 = sand.u32 %s125, 1
          %s405 = scalar_lea.sflag [#allocation4], %s404
          %s406 = sand.u32 %s125, 1
          %s407 = smul.addr %s406, 8
          %s408 = scalar_lea.vmem [#allocation8], %s407
          %409 = dma.done %s405, 128
        $region60: #{tpu_custom_call.1} parent=55 // pred_fallthru
          _
      $region56: #{tpu_custom_call.1} parent=5 // pred_fallthru
        _
    $region6: #{tpu_custom_call.1} parent=1 // loop_footer
      %s21 = sadd.s32 1, %s17
    $region7: #{tpu_custom_call.1} parent=1 // loop_footer_branch
      %16 = sbr.rel target = $region3
    $region8: #{tpu_custom_call.1} parent=1 // loop_exit
      _
    %410 = vsyncpa [#allocation3], 1
    %s411 = scalar_lea.sflag [#allocation3], 1
    %412 = vsyncpa %s411, 1
    %413 = vsyncpa [#allocation6], 1
    %414 = vsyncpa [#allocation4], 1
    %s415 = scalar_lea.sflag [#allocation4], 1
    %416 = vsyncpa %s415, 1

</llo_original>
